<compile_context>
chip_gen: v7x
topology: tpu7x:2x2x1
jax: 0.10.0
libtpu: 0.0.40
codegen_flags: <defaults>
</compile_context>

<pallas_src>
import math

import jax
import jax.numpy as jnp
from jax import lax
from jax.experimental import pallas as pl
from jax.experimental.pallas import tpu as pltpu


# --------------------------------------------------------------------------
# Pallas kernel: per-sample negative log density of the mixture (incl. prior)
# --------------------------------------------------------------------------
def _make_gmm_kernel(exp_in_bf16: bool):
    def kernel(xt_ref, nhp_ref, mp_ref, cq_ref, out_ref):
        # xt_ref : VMEM (D, TN)  x^T tile, lane-dense (f32 or bf16 stream)
        # nhp_ref: VMEM (K, D)   -0.5 * exp(neglogvar)                 (f32)
        # mp_ref : VMEM (K, D)   mean * exp(neglogvar)                 (f32)
        # cq_ref : VMEM (K, 1)   per-component constant (+ scalar prior)(f32)
        # out_ref: VMEM (1, TN)  -(logsumexp_k y[k,n] + prior), lane-dense row
        xf = xt_ref[...].astype(jnp.float32)              # (D, TN)
        xx = xf * xf                                       # (D, TN)

        # (K, D) @ (D, TN) -> (K, TN) on the MXU (standard contraction)
        dn = (((1,), (0,)), ((), ()))
        y = (lax.dot_general(nhp_ref[...], xx, dn,
                             preferred_element_type=jnp.float32)
             + lax.dot_general(mp_ref[...], xf, dn,
                               preferred_element_type=jnp.float32)
             + cq_ref[...])                                # (K, TN)

        # logsumexp over mixture components (sublane axis) -> (1, TN)
        m = jnp.max(y, axis=0, keepdims=True)              # (1, TN)
        t = y - m
        if exp_in_bf16:
            p = jnp.exp(t.astype(jnp.bfloat16)).astype(jnp.float32)
        else:
            p = jnp.exp(t)
        lse = m + jnp.log(jnp.sum(p, axis=0, keepdims=True))
        out_ref[...] = -lse

    return kernel


# --------------------------------------------------------------------------
# Parameter-only prior log-prob (glue; scalar, independent of x)
# --------------------------------------------------------------------------
def _softball_log_prob(z, radius, sharpness, dim):
    norm_const = math.lgamma(1.0 + dim * 0.5) - dim * (
        math.log(radius) + 0.5 * math.log(math.pi)
    )
    zn = jnp.sqrt(jnp.sum(z * z, axis=-1))
    return norm_const - jnp.log(1.0 + jnp.exp(sharpness * (zn / radius - 1.0)))


def _gaussian_log_prob(x, mu, sd):
    return -((x - mu) ** 2) / (2.0 * sd * sd) - math.log(sd) - 0.5 * math.log(2.0 * math.pi)


def _prior_log_prob(mean, neglogvar, weight, dim, n_mix_comp,
                    mean_init, sd_init, weight_alpha, cov_prior):
    p = math.lgamma(n_mix_comp * weight_alpha) - n_mix_comp * math.lgamma(weight_alpha)
    if weight_alpha != 1:
        probs = jax.nn.softmax(weight, axis=-1)
        p = p + (weight_alpha - 1.0) * jnp.sum(jnp.log(probs))
    p = p + jnp.sum(_softball_log_prob(mean, mean_init[0], mean_init[1], dim))
    if cov_prior:
        nlv_mean = -2.0 * math.log(sd_init[0])
        p = p + jnp.sum(_gaussian_log_prob(neglogvar, nlv_mean, sd_init[1]))
    return jnp.asarray(p, dtype=jnp.float32)


# --------------------------------------------------------------------------
# Tile/pad picker: pad N to a 256 multiple, prefer large tiles with an even
# grid (>= 2 steps) so both v7x TensorCores get balanced work.
# --------------------------------------------------------------------------
_TILE_CANDIDATES = (8192, 4096, 2048, 1024, 512, 256, 128)


def _pick_tiling(n):
    n_pad = max(256, -(-n // 256) * 256)
    for want in (lambda g: g >= 2 and g % 2 == 0,   # balanced across 2 TCs
                 lambda g: g >= 2,
                 lambda g: True):
        for t in _TILE_CANDIDATES:
            if n_pad % t == 0 and want(n_pad // t):
                return t, n_pad
    return n_pad, n_pad  # single full-extent tile (block == full array dims)


# --------------------------------------------------------------------------
# Wrapper
# --------------------------------------------------------------------------
def gmm_forward(x, mean, neglogvar, weight, *,
                mean_init=(2.0, 5.0), sd_init=(0.5, 1.0), weight_alpha=1,
                cov_prior=True, tile_n=None, fast_math=False):
    """Negative log density of x under the GMM (== GaussianMixture.forward).

    fast_math=True streams x in bfloat16 and evaluates exp(y-m) in bfloat16 on
    the EUP (v6e/v7x win); accuracy drops from ~1e-5 to ~1e-1 absolute.
    """
    n, dim = x.shape
    k = mean.shape[0]

    mean = mean.astype(jnp.float32)
    neglogvar = neglogvar.astype(jnp.float32)
    weight = weight.astype(jnp.float32)

    pi_term = -0.5 * dim * math.log(2.0 * math.pi)
    neglogvar_factor = 0.5  # diagonal covariance

    prec = jnp.exp(neglogvar)                                 # (K, D)
    log_w = jax.nn.log_softmax(weight, axis=0)                # (K,)
    prior = _prior_log_prob(mean, neglogvar, weight, dim, k,
                            mean_init, sd_init, weight_alpha, cov_prior)

    # per-component constant with the scalar prior folded in:
    #   logsumexp_k (y_k + prior) == logsumexp_k y_k + prior
    cq = (-0.5 * jnp.sum(mean * mean * prec, axis=-1)
          + neglogvar_factor * jnp.sum(neglogvar, axis=-1)
          + pi_term + log_w + prior).reshape(k, 1).astype(jnp.float32)  # (K, 1)
    nhp = (-0.5 * prec).astype(jnp.float32)                   # (K, D)  (-0.5 folded)
    mp = (mean * prec).astype(jnp.float32)                    # (K, D)

    if tile_n is None:
        tile_n, n_pad = _pick_tiling(n)
    else:
        assert tile_n == n or tile_n % 128 == 0, \
            "tile_n must be a multiple of 128 (or equal to N)"
        n_pad = -(-n // tile_n) * tile_n

    # Lane-dense x stream: x^T is (D, N); with small D the tile has no lane
    # padding and the f32 cast / x*x touch only the data that is actually used.
    x_dtype = jnp.bfloat16 if fast_math else jnp.float32
    xt = x.T.astype(x_dtype)                                  # (D, N)
    if n_pad != n:
        xt = jnp.pad(xt, ((0, 0), (0, n_pad - n)))

    grid = (n_pad // tile_n,)
    out2d = pl.pallas_call(
        _make_gmm_kernel(fast_math),
        out_shape=jax.ShapeDtypeStruct((1, n_pad), jnp.float32),
        grid=grid,
        in_specs=[
            pl.BlockSpec((dim, tile_n), lambda i: (0, i)),    # x^T tile (lane-dense)
            pl.BlockSpec((k, dim), lambda i: (0, 0)),         # -0.5 * prec (resident)
            pl.BlockSpec((k, dim), lambda i: (0, 0)),         # mean * prec (resident)
            pl.BlockSpec((k, 1), lambda i: (0, 0)),           # cq (+ prior)
        ],
        out_specs=pl.BlockSpec((1, tile_n), lambda i: (0, i)),  # lane-dense row
        compiler_params=pltpu.CompilerParams(
            dimension_semantics=("parallel",)),
    )(xt, nhp, mp, cq)

    return out2d[0, :n]


# --------------------------------------------------------------------------
# Deterministic parameter init (mirrors GaussianMixture.__init__, diagonal cov)
# --------------------------------------------------------------------------
def init_gmm_params(key, n_mix_comp, dim, mean_init=(2.0, 5.0), sd_init=(0.5, 1.0)):
    k1, k2 = jax.random.split(key)
    radius = mean_init[0]
    # softball.sample(n_mix_comp): approximate uniform-in-ball sampling
    s = jax.random.normal(k1, (n_mix_comp, dim), dtype=jnp.float32)
    s = s / jnp.linalg.norm(s, axis=-1, keepdims=True)
    local_len = radius * jax.random.uniform(k2, (n_mix_comp, 1),
                                            dtype=jnp.float32) ** (1.0 / dim)
    mean = s * local_len                                            # (K, D)
    neglogvar = jnp.full((n_mix_comp, dim), -2.0 * math.log(sd_init[0]),
                         dtype=jnp.float32)                         # (K, D) diagonal
    weight = jnp.ones((n_mix_comp,), dtype=jnp.float32)             # (K,)
    return mean, neglogvar, weight


# --------------------------------------------------------------------------
# Pure-JAX reference (direct transcription of the PyTorch forward)
# --------------------------------------------------------------------------
def gmm_forward_ref(x, mean, neglogvar, weight, *,
                    mean_init=(2.0, 5.0), sd_init=(0.5, 1.0),
                    weight_alpha=1, cov_prior=True):
    n, dim = x.shape
    k = mean.shape[0]
    pi_term = -0.5 * dim * math.log(2.0 * math.pi)
    cov = jnp.exp(-neglogvar)
    y = -jnp.sum((x[:, None, :] - mean) ** 2 / (2.0 * cov), axis=-1)
    y = y + 0.5 * jnp.sum(neglogvar, axis=-1)
    y = y + pi_term
    y = y + jax.nn.log_softmax(weight, axis=0)
    y = jax.scipy.special.logsumexp(y, axis=-1)
    y = y + _prior_log_prob(mean, neglogvar, weight, dim, k,
                            mean_init, sd_init, weight_alpha, cov_prior)
    return -y


if __name__ == "__main__":
    # TODO(synk): sampling / representation-selection methods (sample,
    # component_sample, sample_new_points, choose_best_representations,
    # choose_old_or_new, reshape_targets) are not part of forward() and are
    # not implemented here.
    N, D, K = 1024, 32, 16
    key = jax.random.PRNGKey(0)
    kx, kp = jax.random.split(key)

    x = jax.random.normal(kx, (N, D), dtype=jnp.float32)
    mean, neglogvar, weight = init_gmm_params(kp, K, D)

    ref = gmm_forward_ref(x, mean, neglogvar, weight)

    # exact (f32) path
    out = jax.block_until_ready(gmm_forward(x, mean, neglogvar, weight))
    assert out.shape == (N,)
    assert jnp.allclose(out, ref, rtol=1e-4, atol=1e-4), (
        f"f32 path mismatch: max abs err {float(jnp.max(jnp.abs(out - ref)))}"
    )

    # fast path: bf16 x stream + bf16 EUP exp (looser tolerance by design)
    out_fast = jax.block_until_ready(
        gmm_forward(x, mean, neglogvar, weight, fast_math=True))
    assert jnp.allclose(out_fast, ref, rtol=5e-3, atol=0.5), (
        f"fast_math path mismatch: max abs err "
        f"{float(jnp.max(jnp.abs(out_fast - ref)))}"
    )

    # ragged N (exercises the pad-to-256 + slice path)
    n2 = 1000
    out2 = jax.block_until_ready(gmm_forward(x[:n2], mean, neglogvar, weight))
    ref2 = gmm_forward_ref(x[:n2], mean, neglogvar, weight)
    assert out2.shape == (n2,)
    assert jnp.allclose(out2, ref2, rtol=1e-4, atol=1e-4), (
        f"ragged-N mismatch: max abs err {float(jnp.max(jnp.abs(out2 - ref2)))}"
    )

    print("KERNEL_OK")
</pallas_src>

<mosaic_0001>
module attributes {stable_mosaic.version = 11 : i64} {
  func.func @kernel(%arg0: i32, %arg1: memref<32x512xf32, #tpu.memory_space<vmem>>, %arg2: memref<16x32xf32, #tpu.memory_space<vmem>>, %arg3: memref<16x32xf32, #tpu.memory_space<vmem>>, %arg4: memref<16x1xf32, #tpu.memory_space<vmem>>, %arg5: memref<1x512xf32, #tpu.memory_space<vmem>>) attributes {dimension_semantics = [#tpu.dimension_semantics<parallel>], iteration_bounds = array<i64: 2>, scalar_prefetch = 0 : i64, scratch_operands = 0 : i64, tpu.core_type = #tpu.core_type<tc>, window_params = [{transform_indices = @transform_0, window_bounds = array<i64: 32, 512>}, {pipeline_mode = #tpu.pipeline_mode<synchronous>, transform_indices = @transform_1, window_bounds = array<i64: 16, 32>}, {pipeline_mode = #tpu.pipeline_mode<synchronous>, transform_indices = @transform_2, window_bounds = array<i64: 16, 32>}, {pipeline_mode = #tpu.pipeline_mode<synchronous>, transform_indices = @transform_3, window_bounds = array<i64: 16, 1>}, {transform_indices = @transform_4, window_bounds = array<i64: 1, 512>}]} {
    %c0 = arith.constant 0 : index
    %c0_0 = arith.constant 0 : index
    %0 = vector.load %arg1[%c0, %c0_0] : memref<32x512xf32, #tpu.memory_space<vmem>>, vector<32x512xf32>
    %1 = arith.mulf %0, %0 : vector<32x512xf32>
    %c0_1 = arith.constant 0 : index
    %c0_2 = arith.constant 0 : index
    %2 = vector.load %arg2[%c0_1, %c0_2] : memref<16x32xf32, #tpu.memory_space<vmem>>, vector<16x32xf32>
    %cst = arith.constant dense<0.000000e+00> : vector<16x512xf32>
    %3 = tpu.matmul %2, %1, %cst {dimension_numbers = #tpu.dot_dimension_numbers<[1], [0], [0], [1], [0, 0, 1, 1], [], []>} : vector<16x32xf32>, vector<32x512xf32>, vector<16x512xf32> -> vector<16x512xf32>
    %c0_3 = arith.constant 0 : index
    %c0_4 = arith.constant 0 : index
    %4 = vector.load %arg3[%c0_3, %c0_4] : memref<16x32xf32, #tpu.memory_space<vmem>>, vector<16x32xf32>
    %cst_5 = arith.constant dense<0.000000e+00> : vector<16x512xf32>
    %5 = tpu.matmul %4, %0, %cst_5 {dimension_numbers = #tpu.dot_dimension_numbers<[1], [0], [0], [1], [0, 0, 1, 1], [], []>} : vector<16x32xf32>, vector<32x512xf32>, vector<16x512xf32> -> vector<16x512xf32>
    %6 = arith.addf %3, %5 : vector<16x512xf32>
    %c0_6 = arith.constant 0 : index
    %c0_7 = arith.constant 0 : index
    %7 = vector.load %arg4[%c0_6, %c0_7] : memref<16x1xf32, #tpu.memory_space<vmem>>, vector<16x1xf32>
    %8 = vector.broadcast %7 : vector<16x1xf32> to vector<16x512xf32>
    %9 = arith.addf %6, %8 : vector<16x512xf32>
    %cst_8 = arith.constant dense<0xFF800000> : vector<512xf32>
    %10 = vector.multi_reduction <maximumf>, %9, %cst_8 [0] : vector<16x512xf32> to vector<512xf32>
    %11 = vector.shape_cast %10 : vector<512xf32> to vector<1x512xf32>
    %12 = vector.broadcast %11 : vector<1x512xf32> to vector<16x512xf32>
    %13 = arith.subf %9, %12 : vector<16x512xf32>
    %14 = math.exp %13 : vector<16x512xf32>
    %cst_9 = arith.constant dense<0.000000e+00> : vector<512xf32>
    %15 = vector.multi_reduction <add>, %14, %cst_9 [0] : vector<16x512xf32> to vector<512xf32>
    %16 = vector.shape_cast %15 : vector<512xf32> to vector<1x512xf32>
    %17 = math.log %16 : vector<1x512xf32>
    %18 = arith.addf %11, %17 : vector<1x512xf32>
    %cst_10 = arith.constant 0.000000e+00 : f32
    %19 = vector.broadcast %cst_10 : f32 to vector<1x512xf32>
    %20 = arith.subf %19, %18 : vector<1x512xf32>
    %c0_11 = arith.constant 0 : index
    %c0_12 = arith.constant 0 : index
    %21 = vector.load %arg5[%c0_11, %c0_12] : memref<1x512xf32, #tpu.memory_space<vmem>>, vector<1x512xf32>
    tpu.vector_store %arg5[%c0_11, %c0_12], %20 {strides = array<i32>} : memref<1x512xf32, #tpu.memory_space<vmem>>, vector<1x512xf32>,
    return
  }
  func.func @transform_0(%arg0: i32) -> (i32, i32) {
    %c0_i32 = arith.constant 0 : i32
    %c0_i32_0 = arith.constant 0 : i32
    return %c0_i32, %arg0 : i32, i32
  }
  func.func @transform_1(%arg0: i32) -> (i32, i32) {
    %c0_i32 = arith.constant 0 : i32
    %c0_i32_0 = arith.constant 0 : i32
    %c0_i32_1 = arith.constant 0 : i32
    return %c0_i32, %c0_i32_0 : i32, i32
  }
  func.func @transform_2(%arg0: i32) -> (i32, i32) {
    %c0_i32 = arith.constant 0 : i32
    %c0_i32_0 = arith.constant 0 : i32
    %c0_i32_1 = arith.constant 0 : i32
    return %c0_i32, %c0_i32_0 : i32, i32
  }
  func.func @transform_3(%arg0: i32) -> (i32, i32) {
    %c0_i32 = arith.constant 0 : i32
    %c0_i32_0 = arith.constant 0 : i32
    %c0_i32_1 = arith.constant 0 : i32
    return %c0_i32, %c0_i32_0 : i32, i32
  }
  func.func @transform_4(%arg0: i32) -> (i32, i32) {
    %c0_i32 = arith.constant 0 : i32
    %c0_i32_0 = arith.constant 0 : i32
    return %c0_i32, %arg0 : i32, i32
  }
}

</mosaic_0001>

<llo_original>
// kernel: tpu_custom_call.1
$region0: #{tpu_custom_call.1}
  #allocation0 [shape = 'u32[]', space=smem, size = 0x4, offset = 0x4, fixed_abs, tag = 'smem constant byte address 0x4 - core index']
  #allocation1 [shape = 'u32[144,128]{1,0:T(1,128)}', space=vmem, size = 0x12000, scoped, tag = 'internal scratch']
  %s0 = inlined_call_operand.hbm [shape: f32[32,1024], index: 0, kind: input, shape index: {}]
  %s1 = inlined_call_operand.vmem [shape: f32[16,32], index: 1, kind: input, shape index: {}]
  %s2 = inlined_call_operand.hbm [shape: f32[16,32], index: 2, kind: input, shape index: {}]
  %s3 = inlined_call_operand.vmem [shape: f32[16,1], index: 3, kind: input, shape index: {}]
  %s4 = inlined_call_operand.hbm [shape: f32[1,1024], index: 4, kind: output, shape index: {}]
  %s5 = sld [smem:[#allocation0]]
  $region57: #{tpu_custom_call.1} parent=0
    _
  %s7 = ssub.s32 1, %s5
  %s8 = scalar_select 0, %s7, %s5
  $region1: #{tpu_custom_call.1} parent=0
    #allocation2 [shape = 'u8[131072]{0}', space=vmem, size = 0x20000, scoped, tag = 'input window, operand 0']
    #allocation3 [shape = 's32[2]{0}', space=sflag, size = 0x8, scoped, tag = 'scoped memory for tpu_custom_call.1']
    #allocation4 [shape = 's32[2]{0}', space=sflag, size = 0x8, scoped, tag = 'scoped memory for tpu_custom_call.1']
    #allocation5 [shape = 'u8[8192]{0}', space=vmem, size = 0x2000, scoped, tag = 'input window, operand 2, single buffered']
    #allocation6 [shape = 's32[1]{0}', space=sflag, size = 0x4, scoped, tag = 'scoped memory for tpu_custom_call.1']
    #allocation7 [shape = 'u8[4096]{0}', space=vmem, size = 0x1000, scoped, tag = 'output window, operand 0']
    %9 = vsyncpa [#allocation3], 0
    %s10 = scalar_lea.sflag [#allocation3], 1
    %11 = vsyncpa %s10, 0
    %12 = vsyncpa [#allocation6], 0
    %13 = vsyncpa [#allocation4], 0
    %s14 = scalar_lea.sflag [#allocation4], 1
    %15 = vsyncpa %s14, 0
    loop: start=0, step=1, limit=4
    $region2: #{tpu_custom_call.1} parent=1 // loop_pre_header
      _
    $region3: #{tpu_custom_call.1} parent=1 // loop_header
      %s17 = sphi 0, %s21
      %p18 = scmp.ge.s32.totalorder %s17, 4
      %s27 = sphi 0, %s29
      %s30 = sphi 0, %s27
      %s31 = sphi 0, %s30
      %s47 = sphi 0, %s31
      %s51 = sphi 0, %s51
      %s53 = sphi 0, %s51
      %s54 = sphi 0, %s53
      %s68 = sphi 0, %s54
      %s72 = sphi 0, %s72
      %s74 = sphi 0, %s72
      %s75 = sphi 0, %s74
      %s89 = sphi 0, %s75
      %s93 = sphi 0, %s93
      %s95 = sphi 0, %s93
      %s96 = sphi 0, %s95
      %s110 = sphi 0, %s96
      %s116 = sphi 0, %s118
      %s119 = sphi 0, %s116
      %s120 = sphi 0, %s119
      %s136 = sphi 0, %s120
    $region4: #{tpu_custom_call.1} parent=1 // loop_header_branch
      %20 = sbr.rel (%p18) target = $region8
    $region5: #{tpu_custom_call.1} parent=1 // loop_body
      %s22 = ssub.s32 %s17, 1
      %s23 = ssub.s32 %s17, 2
      %s24 = sadd.s32 %s17, 1
      %s25 = ssub.s32 %s17, %s24
      %p26 = scmp.eq.s32.totalorder %s25, 0
      %s28 = sadd.s32 %s27, 1
      %s29 = scalar_select %p26, %s27, %s28
      %p32 = pneg %p26
      %p33 = scmp.eq.s32.totalorder %s17, 1
      %p34 = por %p32, %p33
      %p35 = scmp.ne.s32.totalorder %s27, %s30
      %p36 = scmp.eq.s32.totalorder %s17, 0
      %p37 = por %p35, %p36
      %p38 = scmp.ne.s32.totalorder %s27, %s30
      %p39 = scmp.eq.s32.totalorder %s22, 1
      %p40 = por %p38, %p39
      %p41 = scmp.ne.s32.totalorder %s30, %s31
      %p42 = scmp.eq.s32.totalorder %s22, 0
      %p43 = por %p41, %p42
      %p44 = scmp.ne.s32.totalorder %s30, %s31
      %p45 = scmp.eq.s32.totalorder %s23, 1
      %p46 = por %p44, %p45
      %p48 = scmp.ne.s32.totalorder %s31, %s47
      %p49 = scmp.eq.s32.totalorder %s23, 0
      %p50 = por %p48, %p49
      %s52 = sadd.s32 %s51, 1
      %p55 = scmp.eq.s32.totalorder %s17, 1
      %p56 = scmp.ne.s32.totalorder %s51, %s53
      %p57 = scmp.eq.s32.totalorder %s17, 0
      %p58 = por %p56, %p57
      %p59 = scmp.ne.s32.totalorder %s51, %s53
      %p60 = scmp.eq.s32.totalorder %s22, 1
      %p61 = por %p59, %p60
      %p62 = scmp.ne.s32.totalorder %s53, %s54
      %p63 = scmp.eq.s32.totalorder %s22, 0
      %p64 = por %p62, %p63
      %p65 = scmp.ne.s32.totalorder %s53, %s54
      %p66 = scmp.eq.s32.totalorder %s23, 1
      %p67 = por %p65, %p66
      %p69 = scmp.ne.s32.totalorder %s54, %s68
      %p70 = scmp.eq.s32.totalorder %s23, 0
      %p71 = por %p69, %p70
      %s73 = sadd.s32 %s72, 1
      %p76 = scmp.eq.s32.totalorder %s17, 1
      %p77 = scmp.ne.s32.totalorder %s72, %s74
      %p78 = scmp.eq.s32.totalorder %s17, 0
      %p79 = por %p77, %p78
      %p80 = scmp.ne.s32.totalorder %s72, %s74
      %p81 = scmp.eq.s32.totalorder %s22, 1
      %p82 = por %p80, %p81
      %p83 = scmp.ne.s32.totalorder %s74, %s75
      %p84 = scmp.eq.s32.totalorder %s22, 0
      %p85 = por %p83, %p84
      %p86 = scmp.ne.s32.totalorder %s74, %s75
      %p87 = scmp.eq.s32.totalorder %s23, 1
      %p88 = por %p86, %p87
      %p90 = scmp.ne.s32.totalorder %s75, %s89
      %p91 = scmp.eq.s32.totalorder %s23, 0
      %p92 = por %p90, %p91
      %s94 = sadd.s32 %s93, 1
      %p97 = scmp.eq.s32.totalorder %s17, 1
      %p98 = scmp.ne.s32.totalorder %s93, %s95
      %p99 = scmp.eq.s32.totalorder %s17, 0
      %p100 = por %p98, %p99
      %p101 = scmp.ne.s32.totalorder %s93, %s95
      %p102 = scmp.eq.s32.totalorder %s22, 1
      %p103 = por %p101, %p102
      %p104 = scmp.ne.s32.totalorder %s95, %s96
      %p105 = scmp.eq.s32.totalorder %s22, 0
      %p106 = por %p104, %p105
      %p107 = scmp.ne.s32.totalorder %s95, %s96
      %p108 = scmp.eq.s32.totalorder %s23, 1
      %p109 = por %p107, %p108
      %p111 = scmp.ne.s32.totalorder %s96, %s110
      %p112 = scmp.eq.s32.totalorder %s23, 0
      %p113 = por %p111, %p112
      %s114 = ssub.s32 %s17, %s24
      %p115 = scmp.eq.s32.totalorder %s114, 0
      %s117 = sadd.s32 %s116, 1
      %s118 = scalar_select %p115, %s116, %s117
      %p121 = pneg %p115
      %p122 = scmp.eq.s32.totalorder %s17, 1
      %p123 = por %p121, %p122
      %p124 = scmp.ne.s32.totalorder %s116, %s119
      %p125 = scmp.eq.s32.totalorder %s17, 0
      %p126 = por %p124, %p125
      %p127 = scmp.ne.s32.totalorder %s116, %s119
      %p128 = scmp.eq.s32.totalorder %s22, 1
      %p129 = por %p127, %p128
      %p130 = scmp.ne.s32.totalorder %s119, %s120
      %p131 = scmp.eq.s32.totalorder %s22, 0
      %p132 = por %p130, %p131
      %p133 = scmp.ne.s32.totalorder %s119, %s120
      %p134 = scmp.eq.s32.totalorder %s23, 1
      %p135 = por %p133, %p134
      %p137 = scmp.ne.s32.totalorder %s120, %s136
      %p138 = scmp.eq.s32.totalorder %s23, 0
      %p139 = por %p137, %p138
      %p140 = scmp.le.s32.totalorder 1, %s17
      %p141 = scmp.lt.s32.totalorder %s17, 3
      %p142 = pnand %p140, %p141
      %p143 = pneg %p142
      // Predicated region
      $region9: #{tpu_custom_call.1} parent=5 // pred_check
        _
      $region10: #{tpu_custom_call.1} parent=5 // pred_check_branch
        %145 = sbr.rel (%p142) target = $region12
      $region11: #{tpu_custom_call.1} parent=5 // pred_region
        %s146 = ssub.s32 %s17, 1
        // Predicated region
        $region13: #{tpu_custom_call.1} parent=11 // pred_check
          %p147 = pneg %p64
        $region14: #{tpu_custom_call.1} parent=11 // pred_check_branch
          %149 = sbr.rel (%p147) target = $region16
        $region15: #{tpu_custom_call.1} parent=11 // pred_region
          _
        $region16: #{tpu_custom_call.1} parent=11 // pred_fallthru
          _
        // Predicated region
        $region17: #{tpu_custom_call.1} parent=11 // pred_check
          %p150 = pneg %p85
        $region18: #{tpu_custom_call.1} parent=11 // pred_check_branch
          %152 = sbr.rel (%p150) target = $region20
        $region19: #{tpu_custom_call.1} parent=11 // pred_region
          %s154 = ssub.s32 256, 256
          %155 = vsyncadd [#allocation6], %s154
          %s156 = sshll.u32 [#allocation5], 4
          %s157 = int_to_ptr.vmem [resolvable:$true] %s156
          %162 = dma.hbm_to_vmem [thread:$0]  %s2, 256, %s157, [#allocation6], 128, 128, 8
        $region20: #{tpu_custom_call.1} parent=11 // pred_fallthru
          _
        // Predicated region
        $region21: #{tpu_custom_call.1} parent=11 // pred_check
          %p163 = pneg %p106
        $region22: #{tpu_custom_call.1} parent=11 // pred_check_branch
          %165 = sbr.rel (%p163) target = $region24
        $region23: #{tpu_custom_call.1} parent=11 // pred_region
          _
        $region24: #{tpu_custom_call.1} parent=11 // pred_fallthru
          _
      $region12: #{tpu_custom_call.1} parent=5 // pred_fallthru
        _
      %p166 = scmp.lt.s32.totalorder %s17, 2
      // Predicated region
      $region25: #{tpu_custom_call.1} parent=5 // pred_check
        %p167 = pneg %p166
      $region26: #{tpu_custom_call.1} parent=5 // pred_check_branch
        %169 = sbr.rel (%p167) target = $region28
      $region27: #{tpu_custom_call.1} parent=5 // pred_region
        // Predicated region
        $region29: #{tpu_custom_call.1} parent=27 // pred_check
          %p170 = pneg %p37
        $region30: #{tpu_custom_call.1} parent=27 // pred_check_branch
          %172 = sbr.rel (%p170) target = $region32
        $region31: #{tpu_custom_call.1} parent=27 // pred_region
          %s173 = sand.u32 %s27, 1
          %s174 = scalar_lea.sflag [#allocation3], %s173
          %s175 = sand.u32 %s27, 1
          %s176 = smul.addr %s175, 128
          %s177 = scalar_lea.vmem [#allocation2], %s176
          %s178 = smul.u32 4, %s17
          %s180 = ssub.s32 2048, 2048
          %181 = vsyncadd %s174, %s180
          %s182 = smul.addr %s178, 128
          %s183 = scalar_lea.hbm %s0, %s182
          %s184 = sshll.u32 %s177, 4
          %s185 = int_to_ptr.vmem [resolvable:$true] %s184
          %190 = dma.hbm_to_vmem [thread:$0]  %s183, 2048, %s185, %s174, 1024, 512, 32
        $region32: #{tpu_custom_call.1} parent=27 // pred_fallthru
          _
      $region28: #{tpu_custom_call.1} parent=5 // pred_fallthru
        _
      %p191 = scmp.le.s32.totalorder 1, %s17
      %p192 = scmp.lt.s32.totalorder %s17, 3
      %p193 = pnand %p191, %p192
      %p194 = pneg %p193
      // Predicated region
      $region33: #{tpu_custom_call.1} parent=5 // pred_check
        _
      $region34: #{tpu_custom_call.1} parent=5 // pred_check_branch
        %196 = sbr.rel (%p193) target = $region36
      $region35: #{tpu_custom_call.1} parent=5 // pred_region
        %s197 = ssub.s32 %s17, 1
        %s198 = sand.u32 %s30, 1
        %s199 = scalar_lea.sflag [#allocation3], %s198
        %s200 = sand.u32 %s30, 1
        %s201 = smul.addr %s200, 128
        %s202 = scalar_lea.vmem [#allocation2], %s201
        // Predicated region
        $region37: #{tpu_custom_call.1} parent=35 // pred_check
          %p203 = pneg %p43
        $region38: #{tpu_custom_call.1} parent=35 // pred_check_branch
          %205 = sbr.rel (%p203) target = $region40
        $region39: #{tpu_custom_call.1} parent=35 // pred_region
          %206 = dma.done %s199, 2048
        $region40: #{tpu_custom_call.1} parent=35 // pred_fallthru
          _
        // Predicated region
        $region41: #{tpu_custom_call.1} parent=35 // pred_check
          %p207 = pneg %p85
        $region42: #{tpu_custom_call.1} parent=35 // pred_check_branch
          %209 = sbr.rel (%p207) target = $region44
        $region43: #{tpu_custom_call.1} parent=35 // pred_region
          %210 = dma.done [#allocation6], 256
        $region44: #{tpu_custom_call.1} parent=35 // pred_fallthru
          _
        %s211 = sand.u32 %s30, 1
        %s212 = scalar_lea.sflag [#allocation3], %s211
        %s213 = sand.u32 %s30, 1
        %s214 = smul.addr %s213, 128
        %s215 = scalar_lea.vmem [#allocation2], %s214
        %p216 = pneg %p43
        %p217 = pneg %p40
        %p218 = pneg %p64
        %p219 = pneg %p61
        %p220 = pneg %p85
        %p221 = pneg %p82
        %p222 = pneg %p106
        %p223 = pneg %p103
        %p224 = pneg %p132
        %p225 = pneg %p129
        %s226 = sand.u32 %s119, 1
        %s227 = scalar_lea.sflag [#allocation4], %s226
        %s228 = sand.u32 %s119, 1
        %s229 = smul.addr %s228, 4
        %s230 = scalar_lea.vmem [#allocation7], %s229
        %s231 = smul.u32 4, %s22
        %s232 = smul.u32 4, %s22
        %v233 = vld [vmem:[%s202] sm:$0xff]
        %v234 = vld [vmem:[%s202 + $0x8] sm:$0xff]
        %v235 = vld [vmem:[%s202 + $0x10] sm:$0xff]
        %v236 = vld [vmem:[%s202 + $0x18] sm:$0xff]
        %v237 = vld [vmem:[%s202 + $0x20] sm:$0xff]
        %v238 = vld [vmem:[%s202 + $0x28] sm:$0xff]
        %v239 = vld [vmem:[%s202 + $0x30] sm:$0xff]
        %v240 = vld [vmem:[%s202 + $0x38] sm:$0xff]
        %v241 = vld [vmem:[%s202 + $0x40] sm:$0xff]
        %v242 = vld [vmem:[%s202 + $0x48] sm:$0xff]
        %v243 = vld [vmem:[%s202 + $0x50] sm:$0xff]
        %v244 = vld [vmem:[%s202 + $0x58] sm:$0xff]
        %v245 = vld [vmem:[%s202 + $0x60] sm:$0xff]
        %v246 = vld [vmem:[%s202 + $0x68] sm:$0xff]
        %v247 = vld [vmem:[%s202 + $0x70] sm:$0xff]
        %v248 = vld [vmem:[%s202 + $0x78] sm:$0xff]
        %v249 = vmul.f32 %v233, %v233
        %v250 = vmul.f32 %v234, %v234
        %v251 = vmul.f32 %v235, %v235
        %v252 = vmul.f32 %v236, %v236
        %v253 = vmul.f32 %v237, %v237
        %v254 = vmul.f32 %v238, %v238
        %v255 = vmul.f32 %v239, %v239
        %v256 = vmul.f32 %v240, %v240
        %v257 = vmul.f32 %v241, %v241
        %v258 = vmul.f32 %v242, %v242
        %v259 = vmul.f32 %v243, %v243
        %v260 = vmul.f32 %v244, %v244
        %v261 = vmul.f32 %v245, %v245
        %v262 = vmul.f32 %v246, %v246
        %v263 = vmul.f32 %v247, %v247
        %v264 = vmul.f32 %v248, %v248
        %v265 = vld [vmem:[%s1] sm:$0xff]
        %v266 = vld [vmem:[%s1 + $0x8] sm:$0xff]
        %v267 = vld [vmem:[#allocation5] sm:$0xff]
        %v268 = vld [vmem:[#allocation5 + $0x8] sm:$0xff]
        %vm269 = vcmask 261120
        %v271 = vsel %vm269, %v267, 0
        %v274 = vsel %vm269, %v268, 0
        %276 = vmatprep.subr.mxu0 %v234
        %277 = vmatpush1.msra.mxu0 %v233
        %278 = vmatprep.subr.mxu0 %v238
        %279 = vmatpush1.msra.mxu0 %v237
        %280 = vmatprep.subr.mxu0 %v242
        %281 = vmatpush1.msra.mxu0 %v241
        %282 = vmatprep.subr.mxu0 %v246
        %283 = vmatpush1.msra.mxu0 %v245
        %284 = vmatprep.subr.mxu0 0.0
        %285 = vmatpush1.msra.mxu0 0.0
        %286 = vmatprep.subr.mxu0 0.0
        %287 = vmatpush1.msra.mxu0 0.0
        %288 = vmatprep.subr.mxu0 0.0
        %289 = vmatpush1.msra.mxu0 0.0
        %290 = vmatprep.subr.mxu0 0.0
        %291 = vmatpush1.msra.mxu0 0.0
        %292 = vmatprep.subr.mxu0 0.0
        %293 = vmatpush1.msra.mxu0 0.0
        %294 = vmatprep.subr.mxu0 0.0
        %295 = vmatpush1.msra.mxu0 0.0
        %296 = vmatprep.subr.mxu0 0.0
        %297 = vmatpush1.msra.mxu0 0.0
        %298 = vmatprep.subr.mxu0 0.0
        %299 = vmatpush1.msra.mxu0 0.0
        %300 = vmatprep.subr.mxu0 0.0
        %301 = vmatpush1.msra.mxu0 0.0
        %302 = vmatprep.subr.mxu0 0.0
        %303 = vmatpush1.msra.mxu0 0.0
        %304 = vmatprep.subr.mxu0 0.0
        %305 = vmatpush1.msra.mxu0 0.0
        %306 = vmatprep.subr.mxu0 0.0
        %307 = vmatpush1.msra.mxu0 0.0
        %308 = vmatprep.subr.mxu0 0.0
        %309 = vmatpush1.msra.mxu0 0.0
        %310 = vmatprep.subr.mxu0 0.0
        %311 = vmatpush1.msra.mxu0 0.0
        %312 = vmatprep.subr.mxu0 0.0
        %313 = vmatpush1.msra.mxu0 0.0
        %314 = vmatprep.subr.mxu0 0.0
        %315 = vmatpush1.msra.mxu0 0.0
        %316 = vmatprep.subr.mxu0 0.0
        %317 = vmatpush1.msra.mxu0 0.0
        %318 = vmatprep.subr.mxu0 0.0
        %319 = vmatpush1.msra.mxu0 0.0
        %320 = vmatprep.subr.mxu0 0.0
        %321 = vmatpush1.msra.mxu0 0.0
        %322 = vmatprep.subr.mxu0 0.0
        %323 = vmatpush1.msra.mxu0 0.0
        %324 = vmatprep.subr.mxu0 0.0
        %325 = vmatpush1.msra.mxu0 0.0
        %326 = vmatprep.subr.mxu0 0.0
        %327 = vmatpush1.msra.mxu0 0.0
        %328 = vmatprep.subr.mxu0 0.0
        %329 = vmatpush1.msra.mxu0 0.0
        %330 = vmatprep.subr.mxu0 0.0
        %331 = vmatpush1.msra.mxu0 0.0
        %332 = vmatprep.subr.mxu0 0.0
        %333 = vmatpush1.msra.mxu0 0.0
        %334 = vmatprep.subr.mxu0 0.0
        %335 = vmatpush1.msra.mxu0 0.0
        %336 = vmatprep.subr.mxu0 0.0
        %337 = vmatpush1.msra.mxu0 0.0
        %338 = vmatprep.subr.mxu0 0.0
        %339 = vmatpush1.msra.mxu0 0.0
        %340 = vmatprep.mubr.f32.mxu0 0.0
        %341 = vmatmul.mubr.f32.gmra.mrb[0].mxu0 %v271
        %v342 = vpop.f32.mrb[0].mxu0
        %v343 = vadd.f32 0.0, %v342
        %v344 = vpop.f32.mrb[0].mxu0
        %v345 = vadd.f32 0.0, %v344
        %346 = vmatprep.mubr.f32.mxu0 0.0
        %347 = vmatmul.mubr.f32.gmra.mrb[0].mxu0 %v274
        %v348 = vpop.f32.mrb[0].mxu0
        %v349 = vadd.f32 0.0, %v348
        %v350 = vpop.f32.mrb[0].mxu0
        %v351 = vadd.f32 0.0, %v350
        %352 = vdwg.mxu0
        %353 = vmatprep.subr.mxu0 %v236
        %354 = vmatpush1.msra.mxu0 %v235
        %355 = vmatprep.subr.mxu0 %v240
        %356 = vmatpush1.msra.mxu0 %v239
        %357 = vmatprep.subr.mxu0 %v244
        %358 = vmatpush1.msra.mxu0 %v243
        %359 = vmatprep.subr.mxu0 %v248
        %360 = vmatpush1.msra.mxu0 %v247
        %361 = vmatprep.subr.mxu0 0.0
        %362 = vmatpush1.msra.mxu0 0.0
        %363 = vmatprep.subr.mxu0 0.0
        %364 = vmatpush1.msra.mxu0 0.0
        %365 = vmatprep.subr.mxu0 0.0
        %366 = vmatpush1.msra.mxu0 0.0
        %367 = vmatprep.subr.mxu0 0.0
        %368 = vmatpush1.msra.mxu0 0.0
        %369 = vmatprep.subr.mxu0 0.0
        %370 = vmatpush1.msra.mxu0 0.0
        %371 = vmatprep.subr.mxu0 0.0
        %372 = vmatpush1.msra.mxu0 0.0
        %373 = vmatprep.subr.mxu0 0.0
        %374 = vmatpush1.msra.mxu0 0.0
        %375 = vmatprep.subr.mxu0 0.0
        %376 = vmatpush1.msra.mxu0 0.0
        %377 = vmatprep.subr.mxu0 0.0
        %378 = vmatpush1.msra.mxu0 0.0
        %379 = vmatprep.subr.mxu0 0.0
        %380 = vmatpush1.msra.mxu0 0.0
        %381 = vmatprep.subr.mxu0 0.0
        %382 = vmatpush1.msra.mxu0 0.0
        %383 = vmatprep.subr.mxu0 0.0
        %384 = vmatpush1.msra.mxu0 0.0
        %385 = vmatprep.subr.mxu0 0.0
        %386 = vmatpush1.msra.mxu0 0.0
        %387 = vmatprep.subr.mxu0 0.0
        %388 = vmatpush1.msra.mxu0 0.0
        %389 = vmatprep.subr.mxu0 0.0
        %390 = vmatpush1.msra.mxu0 0.0
        %391 = vmatprep.subr.mxu0 0.0
        %392 = vmatpush1.msra.mxu0 0.0
        %393 = vmatprep.subr.mxu0 0.0
        %394 = vmatpush1.msra.mxu0 0.0
        %395 = vmatprep.subr.mxu0 0.0
        %396 = vmatpush1.msra.mxu0 0.0
        %397 = vmatprep.subr.mxu0 0.0
        %398 = vmatpush1.msra.mxu0 0.0
        %399 = vmatprep.subr.mxu0 0.0
        %400 = vmatpush1.msra.mxu0 0.0
        %401 = vmatprep.subr.mxu0 0.0
        %402 = vmatpush1.msra.mxu0 0.0
        %403 = vmatprep.subr.mxu0 0.0
        %404 = vmatpush1.msra.mxu0 0.0
        %405 = vmatprep.subr.mxu0 0.0
        %406 = vmatpush1.msra.mxu0 0.0
        %407 = vmatprep.subr.mxu0 0.0
        %408 = vmatpush1.msra.mxu0 0.0
        %409 = vmatprep.subr.mxu0 0.0
        %410 = vmatpush1.msra.mxu0 0.0
        %411 = vmatprep.subr.mxu0 0.0
        %412 = vmatpush1.msra.mxu0 0.0
        %413 = vmatprep.subr.mxu0 0.0
        %414 = vmatpush1.msra.mxu0 0.0
        %415 = vmatprep.subr.mxu0 0.0
        %416 = vmatpush1.msra.mxu0 0.0
        %417 = vmatprep.mubr.f32.mxu0 0.0
        %418 = vmatmul.mubr.f32.gmra.mrb[0].mxu0 %v271
        %v419 = vpop.f32.mrb[0].mxu0
        %v420 = vadd.f32 0.0, %v419
        %v421 = vpop.f32.mrb[0].mxu0
        %v422 = vadd.f32 0.0, %v421
        %423 = vmatprep.mubr.f32.mxu0 0.0
        %424 = vmatmul.mubr.f32.gmra.mrb[0].mxu0 %v274
        %v425 = vpop.f32.mrb[0].mxu0
        %v426 = vadd.f32 0.0, %v425
        %v427 = vpop.f32.mrb[0].mxu0
        %v428 = vadd.f32 0.0, %v427
        %429 = vdwg.mxu0
        %v431 = vsel %vm269, %v265, 0
        %v434 = vsel %vm269, %v266, 0
        %436 = vmatprep.subr.mxu0 %v250
        %437 = vmatpush1.msra.mxu0 %v249
        %438 = vmatprep.subr.mxu0 %v254
        %439 = vmatpush1.msra.mxu0 %v253
        %440 = vmatprep.subr.mxu0 %v258
        %441 = vmatpush1.msra.mxu0 %v257
        %442 = vmatprep.subr.mxu0 %v262
        %443 = vmatpush1.msra.mxu0 %v261
        %444 = vmatprep.subr.mxu0 0.0
        %445 = vmatpush1.msra.mxu0 0.0
        %446 = vmatprep.subr.mxu0 0.0
        %447 = vmatpush1.msra.mxu0 0.0
        %448 = vmatprep.subr.mxu0 0.0
        %449 = vmatpush1.msra.mxu0 0.0
        %450 = vmatprep.subr.mxu0 0.0
        %451 = vmatpush1.msra.mxu0 0.0
        %452 = vmatprep.subr.mxu0 0.0
        %453 = vmatpush1.msra.mxu0 0.0
        %454 = vmatprep.subr.mxu0 0.0
        %455 = vmatpush1.msra.mxu0 0.0
        %456 = vmatprep.subr.mxu0 0.0
        %457 = vmatpush1.msra.mxu0 0.0
        %458 = vmatprep.subr.mxu0 0.0
        %459 = vmatpush1.msra.mxu0 0.0
        %460 = vmatprep.subr.mxu0 0.0
        %461 = vmatpush1.msra.mxu0 0.0
        %462 = vmatprep.subr.mxu0 0.0
        %463 = vmatpush1.msra.mxu0 0.0
        %464 = vmatprep.subr.mxu0 0.0
        %465 = vmatpush1.msra.mxu0 0.0
        %466 = vmatprep.subr.mxu0 0.0
        %467 = vmatpush1.msra.mxu0 0.0
        %468 = vmatprep.subr.mxu0 0.0
        %469 = vmatpush1.msra.mxu0 0.0
        %470 = vmatprep.subr.mxu0 0.0
        %471 = vmatpush1.msra.mxu0 0.0
        %472 = vmatprep.subr.mxu0 0.0
        %473 = vmatpush1.msra.mxu0 0.0
        %474 = vmatprep.subr.mxu0 0.0
        %475 = vmatpush1.msra.mxu0 0.0
        %476 = vmatprep.subr.mxu0 0.0
        %477 = vmatpush1.msra.mxu0 0.0
        %478 = vmatprep.subr.mxu0 0.0
        %479 = vmatpush1.msra.mxu0 0.0
        %480 = vmatprep.subr.mxu0 0.0
        %481 = vmatpush1.msra.mxu0 0.0
        %482 = vmatprep.subr.mxu0 0.0
        %483 = vmatpush1.msra.mxu0 0.0
        %484 = vmatprep.subr.mxu0 0.0
        %485 = vmatpush1.msra.mxu0 0.0
        %486 = vmatprep.subr.mxu0 0.0
        %487 = vmatpush1.msra.mxu0 0.0
        %488 = vmatprep.subr.mxu0 0.0
        %489 = vmatpush1.msra.mxu0 0.0
        %490 = vmatprep.subr.mxu0 0.0
        %491 = vmatpush1.msra.mxu0 0.0
        %492 = vmatprep.subr.mxu0 0.0
        %493 = vmatpush1.msra.mxu0 0.0
        %494 = vmatprep.subr.mxu0 0.0
        %495 = vmatpush1.msra.mxu0 0.0
        %496 = vmatprep.subr.mxu0 0.0
        %497 = vmatpush1.msra.mxu0 0.0
        %498 = vmatprep.subr.mxu0 0.0
        %499 = vmatpush1.msra.mxu0 0.0
        %500 = vmatprep.mubr.f32.mxu0 0.0
        %501 = vmatmul.mubr.f32.gmra.mrb[0].mxu0 %v431
        %v502 = vpop.f32.mrb[0].mxu0
        %v503 = vadd.f32 %v343, %v502
        %v504 = vpop.f32.mrb[0].mxu0
        %v505 = vadd.f32 %v345, %v504
        %506 = vmatprep.mubr.f32.mxu0 0.0
        %507 = vmatmul.mubr.f32.gmra.mrb[0].mxu0 %v434
        %v508 = vpop.f32.mrb[0].mxu0
        %v509 = vadd.f32 %v349, %v508
        %v510 = vpop.f32.mrb[0].mxu0
        %v511 = vadd.f32 %v351, %v510
        %512 = vdwg.mxu0
        %513 = vmatprep.subr.mxu0 %v252
        %514 = vmatpush1.msra.mxu0 %v251
        %515 = vmatprep.subr.mxu0 %v256
        %516 = vmatpush1.msra.mxu0 %v255
        %517 = vmatprep.subr.mxu0 %v260
        %518 = vmatpush1.msra.mxu0 %v259
        %519 = vmatprep.subr.mxu0 %v264
        %520 = vmatpush1.msra.mxu0 %v263
        %521 = vmatprep.subr.mxu0 0.0
        %522 = vmatpush1.msra.mxu0 0.0
        %523 = vmatprep.subr.mxu0 0.0
        %524 = vmatpush1.msra.mxu0 0.0
        %525 = vmatprep.subr.mxu0 0.0
        %526 = vmatpush1.msra.mxu0 0.0
        %527 = vmatprep.subr.mxu0 0.0
        %528 = vmatpush1.msra.mxu0 0.0
        %529 = vmatprep.subr.mxu0 0.0
        %530 = vmatpush1.msra.mxu0 0.0
        %531 = vmatprep.subr.mxu0 0.0
        %532 = vmatpush1.msra.mxu0 0.0
        %533 = vmatprep.subr.mxu0 0.0
        %534 = vmatpush1.msra.mxu0 0.0
        %535 = vmatprep.subr.mxu0 0.0
        %536 = vmatpush1.msra.mxu0 0.0
        %537 = vmatprep.subr.mxu0 0.0
        %538 = vmatpush1.msra.mxu0 0.0
        %539 = vmatprep.subr.mxu0 0.0
        %540 = vmatpush1.msra.mxu0 0.0
        %541 = vmatprep.subr.mxu0 0.0
        %542 = vmatpush1.msra.mxu0 0.0
        %543 = vmatprep.subr.mxu0 0.0
        %544 = vmatpush1.msra.mxu0 0.0
        %545 = vmatprep.subr.mxu0 0.0
        %546 = vmatpush1.msra.mxu0 0.0
        %547 = vmatprep.subr.mxu0 0.0
        %548 = vmatpush1.msra.mxu0 0.0
        %549 = vmatprep.subr.mxu0 0.0
        %550 = vmatpush1.msra.mxu0 0.0
        %551 = vmatprep.subr.mxu0 0.0
        %552 = vmatpush1.msra.mxu0 0.0
        %553 = vmatprep.subr.mxu0 0.0
        %554 = vmatpush1.msra.mxu0 0.0
        %555 = vmatprep.subr.mxu0 0.0
        %556 = vmatpush1.msra.mxu0 0.0
        %557 = vmatprep.subr.mxu0 0.0
        %558 = vmatpush1.msra.mxu0 0.0
        %559 = vmatprep.subr.mxu0 0.0
        %560 = vmatpush1.msra.mxu0 0.0
        %561 = vmatprep.subr.mxu0 0.0
        %562 = vmatpush1.msra.mxu0 0.0
        %563 = vmatprep.subr.mxu0 0.0
        %564 = vmatpush1.msra.mxu0 0.0
        %565 = vmatprep.subr.mxu0 0.0
        %566 = vmatpush1.msra.mxu0 0.0
        %567 = vmatprep.subr.mxu0 0.0
        %568 = vmatpush1.msra.mxu0 0.0
        %569 = vmatprep.subr.mxu0 0.0
        %570 = vmatpush1.msra.mxu0 0.0
        %571 = vmatprep.subr.mxu0 0.0
        %572 = vmatpush1.msra.mxu0 0.0
        %573 = vmatprep.subr.mxu0 0.0
        %574 = vmatpush1.msra.mxu0 0.0
        %575 = vmatprep.subr.mxu0 0.0
        %576 = vmatpush1.msra.mxu0 0.0
        %577 = vmatprep.mubr.f32.mxu0 0.0
        %578 = vmatmul.mubr.f32.gmra.mrb[0].mxu0 %v431
        %v579 = vpop.f32.mrb[0].mxu0
        %v580 = vadd.f32 %v420, %v579
        %v581 = vpop.f32.mrb[0].mxu0
        %v582 = vadd.f32 %v422, %v581
        %583 = vmatprep.mubr.f32.mxu0 0.0
        %584 = vmatmul.mubr.f32.gmra.mrb[0].mxu0 %v434
        %v585 = vpop.f32.mrb[0].mxu0
        %v586 = vadd.f32 %v426, %v585
        %v587 = vpop.f32.mrb[0].mxu0
        %v588 = vadd.f32 %v428, %v587
        %589 = vdwg.mxu0
        %v590 = vld [vmem:[%s3] sm:$0xff]
        %v591 = vld [vmem:[%s3 + $0x8] sm:$0xff]
        %593 = vset.pattern.permute.xlu0 0
        %594 = vperm.xlu0 %593, %v590
        %v595 = vpop.permute.xlu0 %594
        %598 = vset.pattern.permute.xlu0 0
        %599 = vperm.xlu0 %598, %v591
        %v600 = vpop.permute.xlu0 %599
        %v602 = vadd.f32 %v503, %v595
        %v603 = vadd.f32 %v505, %v595
        %v604 = vadd.f32 %v580, %v595
        %v605 = vadd.f32 %v582, %v595
        %v606 = vadd.f32 %v509, %v600
        %v607 = vadd.f32 %v511, %v600
        %v608 = vadd.f32 %v586, %v600
        %v609 = vadd.f32 %v588, %v600
        %v610 = vmax.f32 %v602, %v606
        %v611 = vrot.slane %v610, 4
        %v612 = vmax.f32 %v610, %v611
        %v613 = vrot.slane %v612, 2
        %v614 = vmax.f32 %v612, %v613
        %v615 = vrot.slane %v614, 1
        %v616 = vmax.f32 %v614, %v615
        %v617 = vmax.f32 %v603, %v607
        %v618 = vrot.slane %v617, 4
        %v619 = vmax.f32 %v617, %v618
        %v620 = vrot.slane %v619, 2
        %v621 = vmax.f32 %v619, %v620
        %v622 = vrot.slane %v621, 1
        %v623 = vmax.f32 %v621, %v622
        %v624 = vmax.f32 %v604, %v608
        %v625 = vrot.slane %v624, 4
        %v626 = vmax.f32 %v624, %v625
        %v627 = vrot.slane %v626, 2
        %v628 = vmax.f32 %v626, %v627
        %v629 = vrot.slane %v628, 1
        %v630 = vmax.f32 %v628, %v629
        %v631 = vmax.f32 %v605, %v609
        %v632 = vrot.slane %v631, 4
        %v633 = vmax.f32 %v631, %v632
        %v634 = vrot.slane %v633, 2
        %v635 = vmax.f32 %v633, %v634
        %v636 = vrot.slane %v635, 1
        %v637 = vmax.f32 %v635, %v636
        %v638 = vsub.f32 %v602, %v616
        %v639 = vsub.f32 %v603, %v623
        %v640 = vsub.f32 %v604, %v630
        %v641 = vsub.f32 %v605, %v637
        %v642 = vsub.f32 %v606, %v616
        %v643 = vsub.f32 %v607, %v623
        %v644 = vsub.f32 %v608, %v630
        %v645 = vsub.f32 %v609, %v637
        %v646 = vmul.f32 %v638, 1.442695
        %v647 = vpow.pop %v646
        %v648 = vmul.f32 %v639, 1.442695
        %v649 = vpow.pop %v648
        %v650 = vmul.f32 %v640, 1.442695
        %v651 = vpow.pop %v650
        %v652 = vmul.f32 %v641, 1.442695
        %v653 = vpow.pop %v652
        %v654 = vmul.f32 %v642, 1.442695
        %v655 = vpow.pop %v654
        %v656 = vmul.f32 %v643, 1.442695
        %v657 = vpow.pop %v656
        %v658 = vmul.f32 %v644, 1.442695
        %v659 = vpow.pop %v658
        %v660 = vmul.f32 %v645, 1.442695
        %v661 = vpow.pop %v660
        %v662 = vadd.f32 %v647, %v655
        %v663 = vrot.slane %v662, 4
        %v664 = vadd.f32 %v662, %v663
        %v665 = vrot.slane %v664, 2
        %v666 = vadd.f32 %v664, %v665
        %v667 = vrot.slane %v666, 1
        %v668 = vadd.f32 %v666, %v667
        %v669 = vadd.f32 %v649, %v657
        %v670 = vrot.slane %v669, 4
        %v671 = vadd.f32 %v669, %v670
        %v672 = vrot.slane %v671, 2
        %v673 = vadd.f32 %v671, %v672
        %v674 = vrot.slane %v673, 1
        %v675 = vadd.f32 %v673, %v674
        %v676 = vadd.f32 %v651, %v659
        %v677 = vrot.slane %v676, 4
        %v678 = vadd.f32 %v676, %v677
        %v679 = vrot.slane %v678, 2
        %v680 = vadd.f32 %v678, %v679
        %v681 = vrot.slane %v680, 1
        %v682 = vadd.f32 %v680, %v681
        %v683 = vadd.f32 %v653, %v661
        %v684 = vrot.slane %v683, 4
        %v685 = vadd.f32 %v683, %v684
        %v686 = vrot.slane %v685, 2
        %v687 = vadd.f32 %v685, %v686
        %v688 = vrot.slane %v687, 1
        %v689 = vadd.f32 %v687, %v688
        %v690 = vlog2.pop %v668
        %v691 = vmul.f32 %v690, 0.6931472
        %v692 = vlog2.pop %v675
        %v693 = vmul.f32 %v692, 0.6931472
        %v694 = vlog2.pop %v682
        %v695 = vmul.f32 %v694, 0.6931472
        %v696 = vlog2.pop %v689
        %v697 = vmul.f32 %v696, 0.6931472
        %v698 = vadd.f32 %v616, %v691
        %v699 = vadd.f32 %v623, %v693
        %v700 = vadd.f32 %v630, %v695
        %v701 = vadd.f32 %v637, %v697
        %v702 = vsub.f32 0.0, %v698
        %v703 = vsub.f32 0.0, %v699
        %v704 = vsub.f32 0.0, %v700
        %v705 = vsub.f32 0.0, %v701
        %v710 = vcombine.low %v702, %v703
        %v711 = vcombine.low %v704, %v705
        %v713 = vunpack.c.l.s4 1966171168
        %v714 = vunpack.c.0.s8 %v713
        %v715 = vlaneseq
        %v716 = vshrl.u32 %v715, 7
        %v717 = vsub.s32 %v714, %v716
        %v718 = vrot.slane %v710, %v717
        %v720 = vunpack.c.l.s4 1966171168
        %v721 = vunpack.c.0.s8 %v720
        %v722 = vlaneseq
        %v723 = vshrl.u32 %v722, 7
        %v724 = vsub.s32 %v721, %v723
        %v725 = vrot.slane %v711, %v724
        %v726 = vcombine.low %v718, %v725
        %v728 = vunpack.c.l.s4 1966171168
        %v729 = vunpack.c.0.s8 %v728
        %v730 = vlaneseq
        %v731 = vshrl.u32 %v730, 7
        %v732 = vsub.s32 %v729, %v731
        %v733 = vrot.slane %v726, %v732
        %v735 = vlaneseq
        %vm736 = vcmp.ge.s32.totalorder %v735, 0
        %vm737 = vcmp.lt.s32.totalorder %v735, 512
        %vm738 = vmand %vm736, %vm737
        %739 = vst.msk [vmem:[%s230] sm:$0xf] %vm738, %v733
        %s740 = sand.u32 %s119, 1
        %s741 = scalar_lea.sflag [#allocation4], %s740
        %s742 = sand.u32 %s119, 1
        %s743 = smul.addr %s742, 4
        %s744 = scalar_lea.vmem [#allocation7], %s743
        // Predicated region
        $region45: #{tpu_custom_call.1} parent=35 // pred_check
          %p745 = pneg %p129
        $region46: #{tpu_custom_call.1} parent=35 // pred_check_branch
          %747 = sbr.rel (%p745) target = $region48
        $region47: #{tpu_custom_call.1} parent=35 // pred_region
          %s748 = smul.u32 4, %s22
          %s750 = ssub.s32 64, 64
          %751 = vsyncadd %s741, %s750
          %s752 = smul.addr %s748, 16
          %s753 = scalar_lea.hbm %s4, %s752
          %s755 = sshll.u32 %s744, 4
          %s756 = int_to_ptr.vmem [resolvable:$true] %s755
          %758 = dma.vmem_to_hbm [thread:$0]  %s756, 64, %s753, %s741
        $region48: #{tpu_custom_call.1} parent=35 // pred_fallthru
          _
      $region36: #{tpu_custom_call.1} parent=5 // pred_fallthru
        _
      %p759 = scmp.le.s32.totalorder 2, %s17
      // Predicated region
      $region49: #{tpu_custom_call.1} parent=5 // pred_check
        %p760 = pneg %p759
      $region50: #{tpu_custom_call.1} parent=5 // pred_check_branch
        %762 = sbr.rel (%p760) target = $region52
      $region51: #{tpu_custom_call.1} parent=5 // pred_region
        %s763 = ssub.s32 %s17, 2
        // Predicated region
        $region53: #{tpu_custom_call.1} parent=51 // pred_check
          %p764 = pneg %p135
        $region54: #{tpu_custom_call.1} parent=51 // pred_check_branch
          %766 = sbr.rel (%p764) target = $region56
        $region55: #{tpu_custom_call.1} parent=51 // pred_region
          %s767 = sand.u32 %s120, 1
          %s768 = scalar_lea.sflag [#allocation4], %s767
          %s769 = sand.u32 %s120, 1
          %s770 = smul.addr %s769, 4
          %s771 = scalar_lea.vmem [#allocation7], %s770
          %772 = dma.done %s768, 64
        $region56: #{tpu_custom_call.1} parent=51 // pred_fallthru
          _
      $region52: #{tpu_custom_call.1} parent=5 // pred_fallthru
        _
    $region6: #{tpu_custom_call.1} parent=1 // loop_footer
      %s21 = sadd.s32 1, %s17
    $region7: #{tpu_custom_call.1} parent=1 // loop_footer_branch
      %16 = sbr.rel target = $region3
    $region8: #{tpu_custom_call.1} parent=1 // loop_exit
      _
    %773 = vsyncpa [#allocation3], 1
    %s774 = scalar_lea.sflag [#allocation3], 1
    %775 = vsyncpa %s774, 1
    %776 = vsyncpa [#allocation6], 1
    %777 = vsyncpa [#allocation4], 1
    %s778 = scalar_lea.sflag [#allocation4], 1
    %779 = vsyncpa %s778, 1

</llo_original>
